<compile_context>
chip_gen: v5e
topology: v5e:2x2
jax: 0.10.0
libtpu: 0.0.40
codegen_flags: <defaults>
</compile_context>

<pallas_src>
import functools

import jax
import jax.numpy as jnp
from jax.experimental import pallas as pl
from jax.experimental.pallas import tpu as pltpu


# ---------------------------------------------------------------------------
# Sizing helpers (lane-padding aware)
# ---------------------------------------------------------------------------

def _round_up(x, m):
    return (x + m - 1) // m * m


def _sublane_granule(elt_bytes):
    # f32 -> 8, bf16 -> 16, int8/fp8 -> 32 (sub-32-bit packs along sublanes).
    return 8 * max(1, 4 // int(elt_bytes))


def _pad2_bytes(sub, lane, elt_bytes):
    """VMEM bytes of a (sublane, lane) tile after (8k, 128) padding."""
    return (_round_up(max(int(sub), 1), _sublane_granule(elt_bytes))
            * _round_up(max(int(lane), 1), 128) * int(elt_bytes))


def _vmem_capacity_bytes():
    """Best-effort VMEM capacity query; defaults to 128 MiB (v5e/v6e)."""
    try:
        info = pltpu.get_tpu_info()
        cap = getattr(info, "vmem_capacity_bytes", None)
        if cap:
            return int(cap)
    except Exception:
        pass
    return 128 * 1024 * 1024


def _compiler_params(needed_bytes, vmem_cap, dimension_semantics):
    limit = int(min(max(needed_bytes + (2 << 20), 16 << 20), int(0.92 * vmem_cap)))
    return pltpu.CompilerParams(
        dimension_semantics=tuple(dimension_semantics),
        vmem_limit_bytes=limit)


def _pick_bn(N, per_sample_bytes, target_bytes, min_steps=2):
    """Largest divisor bn of N with bn*per_sample <= target, keeping (when
    possible) >= min_steps grid steps so both v7x TensorCores get work."""
    best = 1
    for d in range(1, N + 1):
        if N % d:
            continue
        if d * per_sample_bytes > target_bytes:
            continue
        if N >= min_steps and N // d < min_steps:
            continue
        best = max(best, d)
    return best


def _pick_tiles(sub_dim, lane_dim, elt, target_bytes):
    """Split-path tile (t_sub, t_lane): t_sub multiple of the sublane granule
    (or the full dim), t_lane multiple of 128 (or the full dim), padded block
    size <= target_bytes."""
    sub_g = _sublane_granule(elt)
    if _pad2_bytes(sub_dim, lane_dim, elt) <= target_bytes:
        return sub_dim, lane_dim
    row = _round_up(lane_dim, 128) * elt
    t_sub = (target_bytes // row) // sub_g * sub_g
    if t_sub >= sub_g:
        return min(t_sub, sub_dim), lane_dim
    # Even sub_g rows at full lane width exceed the target: tile the lanes too.
    t_sub = min(sub_g, sub_dim)
    t_lane = max(128, (target_bytes // (_round_up(t_sub, sub_g) * elt)) // 128 * 128)
    t_lane = min(t_lane, lane_dim)
    return t_sub, t_lane


# ---------------------------------------------------------------------------
# Single-pass kernels (one read + one write of x)
# ---------------------------------------------------------------------------

def _gct_kernel_hw_last(x_ref, p_ref, o_ref, *, eps, mode, after_relu):
    # x_ref: (bn, C, HW) -- HW on lanes.  p_ref: (C, 3) = [alpha|gamma|beta].
    x_raw = x_ref[...]
    x = x_raw.astype(jnp.float32)
    p = p_ref[...]
    alpha = p[:, 0:1][None]                                               # (1, C, 1)
    gamma = p[:, 1:2][None]
    beta = p[:, 2:3][None]

    if mode == "l2":
        ss = jnp.sum(x * x, axis=-1, keepdims=True)                       # (bn, C, 1)
        embedding = jnp.sqrt(ss + eps) * alpha
        mean_sq = jnp.mean(embedding * embedding, axis=1, keepdims=True)  # (bn, 1, 1)
        norm = gamma * jax.lax.rsqrt(mean_sq + eps)
    else:  # l1
        xr = x if after_relu else jnp.abs(x)
        embedding = jnp.sum(xr, axis=-1, keepdims=True) * alpha
        norm = gamma / (jnp.mean(jnp.abs(embedding), axis=1, keepdims=True) + eps)

    gate = 1.0 + jnp.tanh(embedding * norm + beta)                        # (bn, C, 1)
    # Keep the big multiply / store in the input dtype (bf16-friendly).
    o_ref[...] = (x_raw * gate.astype(x_raw.dtype)).astype(o_ref.dtype)


def _gct_kernel_c_last(x_ref, p_ref, o_ref, *, eps, mode, after_relu):
    # x_ref: (bn, HW, C) -- channels lane-dense.  p_ref: (3, C).
    x_raw = x_ref[...]
    x = x_raw.astype(jnp.float32)
    p = p_ref[...]
    alpha = p[0:1][None]                                                  # (1, 1, C)
    gamma = p[1:2][None]
    beta = p[2:3][None]

    if mode == "l2":
        ss = jnp.sum(x * x, axis=1, keepdims=True)                        # (bn, 1, C)
        embedding = jnp.sqrt(ss + eps) * alpha
        mean_sq = jnp.mean(embedding * embedding, axis=-1, keepdims=True)  # (bn, 1, 1)
        norm = gamma * jax.lax.rsqrt(mean_sq + eps)
    else:
        xr = x if after_relu else jnp.abs(x)
        embedding = jnp.sum(xr, axis=1, keepdims=True) * alpha
        norm = gamma / (jnp.mean(jnp.abs(embedding), axis=-1, keepdims=True) + eps)

    gate = 1.0 + jnp.tanh(embedding * norm + beta)                        # (bn, 1, C)
    o_ref[...] = (x_raw * gate.astype(x_raw.dtype)).astype(o_ref.dtype)


# ---------------------------------------------------------------------------
# Two-pass split fallback (channel + spatial tiled) -- used only when even a
# single-buffered single pass would not fit VMEM (v7x: 64 MiB / TC).
# ---------------------------------------------------------------------------

def _gct_reduce_hw_last(x_ref, s_ref, *, mode, after_relu, hw_total, thw):
    # x_ref: (1, tc, thw); s_ref: (1, tc, 1) resident accumulator over hw axis.
    h = pl.program_id(2)

    @pl.when(h == 0)
    def _init():
        s_ref[...] = jnp.zeros_like(s_ref)

    x = x_ref[...].astype(jnp.float32)
    if hw_total % thw:  # mask the spatial tail of the last hw block
        pos = h * thw + jax.lax.broadcasted_iota(jnp.int32, x.shape, 2)
        x = jnp.where(pos < hw_total, x, 0.0)
    if mode == "l2":
        part = jnp.sum(x * x, axis=-1, keepdims=True)
    else:
        xr = x if after_relu else jnp.abs(x)
        part = jnp.sum(xr, axis=-1, keepdims=True)
    s_ref[...] += part


def _gct_reduce_c_last(x_ref, s_ref, *, mode, after_relu, hw_total, thw):
    # x_ref: (1, thw, tc); s_ref: (1, 1, tc) lane-dense resident accumulator.
    h = pl.program_id(2)

    @pl.when(h == 0)
    def _init():
        s_ref[...] = jnp.zeros_like(s_ref)

    x = x_ref[...].astype(jnp.float32)
    if hw_total % thw:
        pos = h * thw + jax.lax.broadcasted_iota(jnp.int32, x.shape, 1)
        x = jnp.where(pos < hw_total, x, 0.0)
    if mode == "l2":
        part = jnp.sum(x * x, axis=1, keepdims=True)
    else:
        xr = x if after_relu else jnp.abs(x)
        part = jnp.sum(xr, axis=1, keepdims=True)
    s_ref[...] += part


def _gct_apply_kernel(x_ref, g_ref, o_ref):
    # x_ref: (1, tc, thw) or (1, thw, tc); g_ref broadcasts along the HW axis.
    x_raw = x_ref[...]
    o_ref[...] = (x_raw * g_ref[...].astype(x_raw.dtype)).astype(o_ref.dtype)


def _gate_from_stat(stat, alpha, gamma, beta, eps, mode):
    # stat: (N, C) per-channel spatial reduction; tiny plain-JAX glue.
    if mode == "l2":
        embedding = jnp.sqrt(stat + eps) * alpha[None, :]
        norm = gamma[None, :] * jax.lax.rsqrt(
            jnp.mean(embedding * embedding, axis=1, keepdims=True) + eps)
    else:
        embedding = stat * alpha[None, :]
        norm = gamma[None, :] / (jnp.mean(jnp.abs(embedding), axis=1, keepdims=True) + eps)
    return 1.0 + jnp.tanh(embedding * norm + beta[None, :])


def _gct_split_nchw(x2, params, *, eps, mode, after_relu, vmem_cap, inplace):
    # x2: (N, C, HW); params: (3, C) f32.
    N, C, HW = x2.shape
    elt = x2.dtype.itemsize
    budget = int(0.8 * vmem_cap)
    target = max(1 << 20, min(8 << 20, budget // 6))
    tc, thw = _pick_tiles(C, HW, elt, target)
    nct, nhw = pl.cdiv(C, tc), pl.cdiv(HW, thw)

    x_spec = pl.BlockSpec((1, tc, thw), lambda n, c, h: (n, c, h))
    s_spec = pl.BlockSpec((1, tc, 1), lambda n, c, h: (n, c, 0))
    x_blk = _pad2_bytes(tc, thw, elt)
    s_blk = _pad2_bytes(tc, 1, 4)

    stat = pl.pallas_call(
        functools.partial(_gct_reduce_hw_last, mode=mode, after_relu=after_relu,
                          hw_total=HW, thw=thw),
        out_shape=jax.ShapeDtypeStruct((N, C, 1), jnp.float32),
        grid_spec=pltpu.PrefetchScalarGridSpec(
            num_scalar_prefetch=0, grid=(N, nct, nhw),
            in_specs=[x_spec], out_specs=s_spec),
        compiler_params=_compiler_params(2 * x_blk + 2 * s_blk, vmem_cap,
                                         ("parallel", "parallel", "arbitrary")),
    )(x2)

    gate = _gate_from_stat(stat[:, :, 0], params[0], params[1], params[2], eps, mode)
    gate = gate.astype(jnp.float32)[:, :, None]                           # (N, C, 1)

    out = pl.pallas_call(
        _gct_apply_kernel,
        out_shape=jax.ShapeDtypeStruct((N, C, HW), x2.dtype),
        grid_spec=pltpu.PrefetchScalarGridSpec(
            num_scalar_prefetch=0, grid=(N, nct, nhw),
            in_specs=[x_spec, s_spec], out_specs=x_spec),
        compiler_params=_compiler_params(4 * x_blk + 2 * s_blk, vmem_cap,
                                         ("parallel", "parallel", "parallel")),
        input_output_aliases=({0: 0} if inplace else {}),
    )(x2, gate)
    return out


def _gct_split_nhwc(x2, params, *, eps, mode, after_relu, vmem_cap, inplace):
    # x2: (N, HW, C); params: (3, C) f32.  Native channels-last (no transposes);
    # stat / gate tiles are fully lane-dense.
    N, HW, C = x2.shape
    elt = x2.dtype.itemsize
    budget = int(0.8 * vmem_cap)
    target = max(1 << 20, min(8 << 20, budget // 6))
    thw, tcl = _pick_tiles(HW, C, elt, target)
    ncl, nhw = pl.cdiv(C, tcl), pl.cdiv(HW, thw)

    x_spec = pl.BlockSpec((1, thw, tcl), lambda n, c, h: (n, h, c))
    s_spec = pl.BlockSpec((1, 1, tcl), lambda n, c, h: (n, 0, c))
    x_blk = _pad2_bytes(thw, tcl, elt)
    s_blk = _pad2_bytes(1, tcl, 4)

    stat = pl.pallas_call(
        functools.partial(_gct_reduce_c_last, mode=mode, after_relu=after_relu,
                          hw_total=HW, thw=thw),
        out_shape=jax.ShapeDtypeStruct((N, 1, C), jnp.float32),
        grid_spec=pltpu.PrefetchScalarGridSpec(
            num_scalar_prefetch=0, grid=(N, ncl, nhw),
            in_specs=[x_spec], out_specs=s_spec),
        compiler_params=_compiler_params(2 * x_blk + 2 * s_blk, vmem_cap,
                                         ("parallel", "parallel", "arbitrary")),
    )(x2)

    gate = _gate_from_stat(stat[:, 0, :], params[0], params[1], params[2], eps, mode)
    gate = gate.astype(jnp.float32)[:, None, :]                           # (N, 1, C)

    out = pl.pallas_call(
        _gct_apply_kernel,
        out_shape=jax.ShapeDtypeStruct((N, HW, C), x2.dtype),
        grid_spec=pltpu.PrefetchScalarGridSpec(
            num_scalar_prefetch=0, grid=(N, ncl, nhw),
            in_specs=[x_spec, s_spec], out_specs=x_spec),
        compiler_params=_compiler_params(4 * x_blk + 2 * s_blk, vmem_cap,
                                         ("parallel", "parallel", "parallel")),
        input_output_aliases=({0: 0} if inplace else {}),
    )(x2, gate)
    return out


# ---------------------------------------------------------------------------
# Public wrapper
# ---------------------------------------------------------------------------

def gct_forward(x, alpha, gamma, beta, *, epsilon=1e-5, mode="l2",
                after_relu=False, data_format="NCHW", force_split=None,
                inplace=False):
    """GCT forward.

    x: (N, C, H, W) if data_format == "NCHW" (PyTorch layout) or (N, H, W, C)
    if "NHWC" (lane-dense path for channels-last data).
    alpha/gamma/beta: any shape reshapeable to (C,), e.g. (1, C, 1, 1).
    inplace=True aliases x's buffer to the output (only safe under donation).
    """
    if mode not in ("l2", "l1"):
        raise ValueError(f"unknown mode {mode!r}")
    if data_format not in ("NCHW", "NHWC"):
        raise ValueError(f"unknown data_format {data_format!r}")

    if data_format == "NCHW":
        N, C, H, W = x.shape
    else:
        N, H, W, C = x.shape
    HW = H * W
    elt = jnp.dtype(x.dtype).itemsize
    vmem_cap = _vmem_capacity_bytes()
    budget = int(0.8 * vmem_cap)

    # Pack the three per-channel params into ONE small f32 tile.
    params = jnp.stack(
        [jnp.asarray(alpha, jnp.float32).reshape(C),
         jnp.asarray(gamma, jnp.float32).reshape(C),
         jnp.asarray(beta, jnp.float32).reshape(C)], axis=0)              # (3, C)

    # Lane-padding-aware footprint of one sample's block and of the param tile.
    if data_format == "NCHW":
        per_sample = _pad2_bytes(C, HW, elt)
        param_tile = _pad2_bytes(C, 3, 4)   # (C, 3) column layout -> 128-lane padded
    else:
        per_sample = _pad2_bytes(HW, C, elt)
        param_tile = _pad2_bytes(3, C, 4)   # (3, C) lane-dense

    # Batch bn samples per grid step so the block is ~2-8 MiB, keeping >= 2
    # parallel grid steps when possible (v7x megacore occupancy).
    target_block = max(per_sample, min(8 << 20, budget // 6))
    bn = _pick_bn(N, per_sample, target_block)
    steps = N // bn
    needed_db = 4 * bn * per_sample + 2 * param_tile      # double-buffered in + out
    needed_sb = 2 * bn * per_sample + 2 * param_tile      # Buffered(1) in + out

    if force_split is True:
        use_split, single_buffered = True, False
    elif force_split is False:
        use_split, single_buffered = False, needed_db > budget
    else:
        if needed_db <= budget:
            use_split, single_buffered = False, False
        elif needed_sb <= budget:
            # v7x (64 MiB VMEM/TC): a single-buffered single pass (1x read +
            # 1x write of x) beats the 1.5x-traffic split for medium blocks.
            use_split, single_buffered = False, True
        else:
            use_split, single_buffered = True, False

    kw = dict(eps=epsilon, mode=mode, after_relu=after_relu)
    io_alias = ({0: 0} if inplace else {})
    # TODO(synk): for N == 1 on v7x, split the sample across TensorCores
    # (partial channel sums exchanged via CMEM) instead of leaving a core idle.

    if not use_split:
        needed = needed_sb if single_buffered else needed_db
        xb_kw = {"pipeline_mode": pl.Buffered(1)} if single_buffered else {}
        if data_format == "NCHW":
            x2 = x.reshape(N, C, HW)
            out = pl.pallas_call(
                functools.partial(_gct_kernel_hw_last, **kw),
                out_shape=jax.ShapeDtypeStruct((N, C, HW), x.dtype),
                grid_spec=pltpu.PrefetchScalarGridSpec(
                    num_scalar_prefetch=0, grid=(steps,),
                    in_specs=[pl.BlockSpec((bn, C, HW), lambda n: (n, 0, 0), **xb_kw),
                              pl.BlockSpec((C, 3), lambda n: (0, 0))],
                    out_specs=pl.BlockSpec((bn, C, HW), lambda n: (n, 0, 0), **xb_kw)),
                compiler_params=_compiler_params(needed, vmem_cap, ("parallel",)),
                input_output_aliases=io_alias,
            )(x2, params.T)                                               # (C, 3)
            return out.reshape(N, C, H, W)
        else:
            x2 = x.reshape(N, HW, C)
            out = pl.pallas_call(
                functools.partial(_gct_kernel_c_last, **kw),
                out_shape=jax.ShapeDtypeStruct((N, HW, C), x.dtype),
                grid_spec=pltpu.PrefetchScalarGridSpec(
                    num_scalar_prefetch=0, grid=(steps,),
                    in_specs=[pl.BlockSpec((bn, HW, C), lambda n: (n, 0, 0), **xb_kw),
                              pl.BlockSpec((3, C), lambda n: (0, 0))],
                    out_specs=pl.BlockSpec((bn, HW, C), lambda n: (n, 0, 0), **xb_kw)),
                compiler_params=_compiler_params(needed, vmem_cap, ("parallel",)),
                input_output_aliases=io_alias,
            )(x2, params)
            return out.reshape(N, H, W, C)

    # Two-pass split fallback: 2 reads + 1 write of x (1.5x HBM traffic).
    if data_format == "NCHW":
        out = _gct_split_nchw(x.reshape(N, C, HW), params, vmem_cap=vmem_cap,
                              inplace=inplace, **kw)
        return out.reshape(N, C, H, W)
    out = _gct_split_nhwc(x.reshape(N, HW, C), params, vmem_cap=vmem_cap,
                          inplace=inplace, **kw)
    return out.reshape(N, H, W, C)


# ---------------------------------------------------------------------------
# Pure-JAX reference (matches the PyTorch module)
# ---------------------------------------------------------------------------

def gct_reference(x, alpha, gamma, beta, epsilon=1e-5, mode="l2", after_relu=False):
    if mode == "l2":
        emb = jnp.sqrt(jnp.sum(x * x, axis=(2, 3), keepdims=True) + epsilon) * alpha
        norm = gamma / jnp.sqrt(jnp.mean(emb * emb, axis=1, keepdims=True) + epsilon)
    else:
        _x = x if after_relu else jnp.abs(x)
        emb = jnp.sum(_x, axis=(2, 3), keepdims=True) * alpha
        norm = gamma / (jnp.mean(jnp.abs(emb), axis=1, keepdims=True) + epsilon)
    gate = 1.0 + jnp.tanh(emb * norm + beta)
    return x * gate


if __name__ == "__main__":
    N, C, H, W = 2, 8, 16, 16
    key = jax.random.PRNGKey(0)
    kx, kg, kb = jax.random.split(key, 3)

    x = jax.random.normal(kx, (N, C, H, W), dtype=jnp.float32)
    # Non-trivial params so the gate is exercised (torch init gamma=0, beta=0
    # would give gate == 1 everywhere).
    alpha = jnp.ones((1, C, 1, 1), dtype=jnp.float32)
    gamma = 0.5 * jax.random.normal(kg, (1, C, 1, 1), dtype=jnp.float32)
    beta = 0.1 * jax.random.normal(kb, (1, C, 1, 1), dtype=jnp.float32)

    ref = gct_reference(x, alpha, gamma, beta, epsilon=1e-5, mode="l2")

    # 1) default single-pass NCHW path (l2)
    out = jax.block_until_ready(gct_forward(x, alpha, gamma, beta))
    assert out.shape == x.shape
    assert jnp.allclose(out, ref, atol=1e-5, rtol=1e-5), "single-pass mismatch"

    # 2) multi-sample blocks (bn > 1 per grid step)
    x8 = jax.random.normal(kx, (8, C, 8, 8), dtype=jnp.float32)
    ref8 = gct_reference(x8, alpha, gamma, beta)
    out8 = jax.block_until_ready(gct_forward(x8, alpha, gamma, beta))
    assert jnp.allclose(out8, ref8, atol=1e-5, rtol=1e-5), "batched-block mismatch"

    # 3) forced two-pass channel/HW-tiled fallback (the path v7x takes for huge C*HW)
    out_split = jax.block_until_ready(
        gct_forward(x, alpha, gamma, beta, force_split=True))
    assert jnp.allclose(out_split, ref, atol=1e-5, rtol=1e-5), "split-path mismatch"

    # 4) channels-last (NHWC) lane-dense single pass + native NHWC split path
    x_nhwc = jnp.transpose(x, (0, 2, 3, 1))
    out_nhwc = jax.block_until_ready(
        gct_forward(x_nhwc, alpha, gamma, beta, data_format="NHWC"))
    assert jnp.allclose(jnp.transpose(out_nhwc, (0, 3, 1, 2)), ref,
                        atol=1e-5, rtol=1e-5), "NHWC path mismatch"
    out_nhwc_s = jax.block_until_ready(
        gct_forward(x_nhwc, alpha, gamma, beta, data_format="NHWC",
                    force_split=True))
    assert jnp.allclose(jnp.transpose(out_nhwc_s, (0, 3, 1, 2)), ref,
                        atol=1e-5, rtol=1e-5), "NHWC split-path mismatch"

    # 5) l1 mode
    out_l1 = jax.block_until_ready(gct_forward(x, alpha, gamma, beta, mode="l1"))
    ref_l1 = gct_reference(x, alpha, gamma, beta, mode="l1")
    assert jnp.allclose(out_l1, ref_l1, atol=1e-5, rtol=1e-5), "l1 mode mismatch"

    # 6) bf16 input: gate applied in bf16, compared against the f32 reference
    x_bf = x.astype(jnp.bfloat16)
    ref_bf = gct_reference(x_bf.astype(jnp.float32), alpha, gamma, beta)
    out_bf = jax.block_until_ready(gct_forward(x_bf, alpha, gamma, beta))
    assert jnp.allclose(out_bf.astype(jnp.float32), ref_bf,
                        atol=3e-2, rtol=3e-2), "bf16 mismatch"

    print("KERNEL_OK")
</pallas_src>

<mosaic_0001>
module attributes {stable_mosaic.version = 11 : i64} {
  func.func @_gct_kernel_hw_last(%arg0: i32, %arg1: memref<1x8x256xf32, #tpu.memory_space<vmem>>, %arg2: memref<8x3xf32, #tpu.memory_space<vmem>>, %arg3: memref<1x8x256xf32, #tpu.memory_space<vmem>>) attributes {dimension_semantics = [#tpu.dimension_semantics<parallel>], iteration_bounds = array<i64: 2>, scalar_prefetch = 0 : i64, scratch_operands = 0 : i64, tpu.core_type = #tpu.core_type<tc>, window_params = [{transform_indices = @transform_0, window_bounds = array<i64: 1, 8, 256>}, {pipeline_mode = #tpu.pipeline_mode<synchronous>, transform_indices = @transform_1, window_bounds = array<i64: 8, 3>}, {transform_indices = @transform_2, window_bounds = array<i64: 1, 8, 256>}]} {
    %c0 = arith.constant 0 : index
    %c0_0 = arith.constant 0 : index
    %c0_1 = arith.constant 0 : index
    %0 = vector.load %arg1[%c0, %c0_0, %c0_1] : memref<1x8x256xf32, #tpu.memory_space<vmem>>, vector<1x8x256xf32>
    %c0_2 = arith.constant 0 : index
    %c0_3 = arith.constant 0 : index
    %1 = vector.load %arg2[%c0_2, %c0_3] : memref<8x3xf32, #tpu.memory_space<vmem>>, vector<8x3xf32>
    %2 = vector.extract_strided_slice %1 {offsets = [0, 0], sizes = [8, 1], strides = [1, 1]} : vector<8x3xf32> to vector<8x1xf32>
    %3 = vector.shape_cast %2 : vector<8x1xf32> to vector<1x8x1xf32>
    %4 = vector.extract_strided_slice %1 {offsets = [0, 1], sizes = [8, 1], strides = [1, 1]} : vector<8x3xf32> to vector<8x1xf32>
    %5 = vector.shape_cast %4 : vector<8x1xf32> to vector<1x8x1xf32>
    %6 = vector.extract_strided_slice %1 {offsets = [0, 2], sizes = [8, 1], strides = [1, 1]} : vector<8x3xf32> to vector<8x1xf32>
    %7 = vector.shape_cast %6 : vector<8x1xf32> to vector<1x8x1xf32>
    %8 = arith.mulf %0, %0 : vector<1x8x256xf32>
    %cst = arith.constant dense<0.000000e+00> : vector<1x8xf32>
    %9 = vector.multi_reduction <add>, %8, %cst [2] : vector<1x8x256xf32> to vector<1x8xf32>
    %10 = vector.shape_cast %9 : vector<1x8xf32> to vector<1x8x1xf32>
    %cst_4 = arith.constant 9.99999974E-6 : f32
    %11 = vector.broadcast %cst_4 : f32 to vector<1x8x1xf32>
    %12 = arith.addf %10, %11 : vector<1x8x1xf32>
    %13 = math.sqrt %12 : vector<1x8x1xf32>
    %14 = arith.mulf %13, %3 : vector<1x8x1xf32>
    %15 = arith.mulf %14, %14 : vector<1x8x1xf32>
    %cst_5 = arith.constant dense<0.000000e+00> : vector<1x1xf32>
    %16 = vector.multi_reduction <add>, %15, %cst_5 [1] : vector<1x8x1xf32> to vector<1x1xf32>
    %17 = vector.shape_cast %16 : vector<1x1xf32> to vector<1x1x1xf32>
    %cst_6 = arith.constant 8.000000e+00 : f32
    %18 = vector.broadcast %cst_6 : f32 to vector<1x1x1xf32>
    %19 = arith.divf %17, %18 : vector<1x1x1xf32>
    %cst_7 = arith.constant 9.99999974E-6 : f32
    %20 = vector.broadcast %cst_7 : f32 to vector<1x1x1xf32>
    %21 = arith.addf %19, %20 : vector<1x1x1xf32>
    %22 = math.rsqrt %21 : vector<1x1x1xf32>
    %23 = vector.broadcast %22 : vector<1x1x1xf32> to vector<1x8x1xf32>
    %24 = arith.mulf %5, %23 : vector<1x8x1xf32>
    %25 = arith.mulf %14, %24 : vector<1x8x1xf32>
    %26 = arith.addf %25, %7 : vector<1x8x1xf32>
    %27 = math.tanh %26 : vector<1x8x1xf32>
    %cst_8 = arith.constant 1.000000e+00 : f32
    %28 = vector.broadcast %cst_8 : f32 to vector<1x8x1xf32>
    %29 = arith.addf %28, %27 : vector<1x8x1xf32>
    %30 = vector.broadcast %29 : vector<1x8x1xf32> to vector<1x8x256xf32>
    %31 = arith.mulf %0, %30 : vector<1x8x256xf32>
    %c0_9 = arith.constant 0 : index
    %c0_10 = arith.constant 0 : index
    %c0_11 = arith.constant 0 : index
    %32 = vector.load %arg3[%c0_9, %c0_10, %c0_11] : memref<1x8x256xf32, #tpu.memory_space<vmem>>, vector<1x8x256xf32>
    tpu.vector_store %arg3[%c0_9, %c0_10, %c0_11], %31 {strides = array<i32>} : memref<1x8x256xf32, #tpu.memory_space<vmem>>, vector<1x8x256xf32>,
    return
  }
  func.func @transform_0(%arg0: i32) -> (i32, i32, i32) {
    %c0_i32 = arith.constant 0 : i32
    %c0_i32_0 = arith.constant 0 : i32
    %c0_i32_1 = arith.constant 0 : i32
    return %arg0, %c0_i32, %c0_i32_0 : i32, i32, i32
  }
  func.func @transform_1(%arg0: i32) -> (i32, i32) {
    %c0_i32 = arith.constant 0 : i32
    %c0_i32_0 = arith.constant 0 : i32
    %c0_i32_1 = arith.constant 0 : i32
    return %c0_i32, %c0_i32_0 : i32, i32
  }
  func.func @transform_2(%arg0: i32) -> (i32, i32, i32) {
    %c0_i32 = arith.constant 0 : i32
    %c0_i32_0 = arith.constant 0 : i32
    %c0_i32_1 = arith.constant 0 : i32
    return %arg0, %c0_i32, %c0_i32_0 : i32, i32, i32
  }
}

</mosaic_0001>

<llo_original>
// kernel: tpu_custom_call.1
$region0: #{tpu_custom_call.1}
  #allocation0 [shape = 'u32[]', space=smem, size = 0x4, offset = 0x4, fixed_abs, tag = 'smem constant byte address 0x4 - core index']
  #allocation1 [shape = 'u32[72,128]{1,0:T(1,128)}', space=vmem, size = 0x9000, scoped, tag = 'internal scratch']
  %s0 = inlined_call_operand.hbm [shape: f32[2,8,256], index: 0, kind: input, shape index: {}]
  %s1 = inlined_call_operand.vmem [shape: f32[8,3], index: 1, kind: input, shape index: {}]
  %s2 = inlined_call_operand.hbm [shape: f32[2,8,256], index: 2, kind: output, shape index: {}]
  %s3 = sld [smem:[#allocation0]]
  $region45: #{tpu_custom_call.1} parent=0
    _
  %s5 = ssub.s32 1, %s3
  %s6 = scalar_select 0, %s5, %s3
  $region1: #{tpu_custom_call.1} parent=0
    #allocation2 [shape = 'u8[16384]{0}', space=vmem, size = 0x4000, scoped, tag = 'input window, operand 0']
    #allocation3 [shape = 's32[2]{0}', space=sflag, size = 0x8, scoped, tag = 'scoped memory for tpu_custom_call.1']
    #allocation4 [shape = 's32[2]{0}', space=sflag, size = 0x8, scoped, tag = 'scoped memory for tpu_custom_call.1']
    #allocation5 [shape = 'u8[16384]{0}', space=vmem, size = 0x4000, scoped, tag = 'output window, operand 0']
    %7 = vsyncpa [#allocation3], 0
    %s8 = scalar_lea.sflag [#allocation3], 1
    %9 = vsyncpa %s8, 0
    %10 = vsyncpa [#allocation4], 0
    %s11 = scalar_lea.sflag [#allocation4], 1
    %12 = vsyncpa %s11, 0
    loop: start=0, step=1, limit=4
    $region2: #{tpu_custom_call.1} parent=1 // loop_pre_header
      _
    $region3: #{tpu_custom_call.1} parent=1 // loop_header
      %s14 = sphi 0, %s18
      %p15 = scmp.ge.s32.totalorder %s14, 4
      %s24 = sphi 0, %s26
      %s27 = sphi 0, %s24
      %s28 = sphi 0, %s27
      %s44 = sphi 0, %s28
      %s48 = sphi 0, %s48
      %s50 = sphi 0, %s48
      %s51 = sphi 0, %s50
      %s65 = sphi 0, %s51
      %s71 = sphi 0, %s73
      %s74 = sphi 0, %s71
      %s75 = sphi 0, %s74
      %s91 = sphi 0, %s75
    $region4: #{tpu_custom_call.1} parent=1 // loop_header_branch
      %17 = sbr.rel (%p15) target = $region8
    $region5: #{tpu_custom_call.1} parent=1 // loop_body
      %s19 = ssub.s32 %s14, 1
      %s20 = ssub.s32 %s14, 2
      %s21 = sadd.s32 %s14, 1
      %s22 = ssub.s32 %s14, %s21
      %p23 = scmp.eq.s32.totalorder %s22, 0
      %s25 = sadd.s32 %s24, 1
      %s26 = scalar_select %p23, %s24, %s25
      %p29 = pneg %p23
      %p30 = scmp.eq.s32.totalorder %s14, 1
      %p31 = por %p29, %p30
      %p32 = scmp.ne.s32.totalorder %s24, %s27
      %p33 = scmp.eq.s32.totalorder %s14, 0
      %p34 = por %p32, %p33
      %p35 = scmp.ne.s32.totalorder %s24, %s27
      %p36 = scmp.eq.s32.totalorder %s19, 1
      %p37 = por %p35, %p36
      %p38 = scmp.ne.s32.totalorder %s27, %s28
      %p39 = scmp.eq.s32.totalorder %s19, 0
      %p40 = por %p38, %p39
      %p41 = scmp.ne.s32.totalorder %s27, %s28
      %p42 = scmp.eq.s32.totalorder %s20, 1
      %p43 = por %p41, %p42
      %p45 = scmp.ne.s32.totalorder %s28, %s44
      %p46 = scmp.eq.s32.totalorder %s20, 0
      %p47 = por %p45, %p46
      %s49 = sadd.s32 %s48, 1
      %p52 = scmp.eq.s32.totalorder %s14, 1
      %p53 = scmp.ne.s32.totalorder %s48, %s50
      %p54 = scmp.eq.s32.totalorder %s14, 0
      %p55 = por %p53, %p54
      %p56 = scmp.ne.s32.totalorder %s48, %s50
      %p57 = scmp.eq.s32.totalorder %s19, 1
      %p58 = por %p56, %p57
      %p59 = scmp.ne.s32.totalorder %s50, %s51
      %p60 = scmp.eq.s32.totalorder %s19, 0
      %p61 = por %p59, %p60
      %p62 = scmp.ne.s32.totalorder %s50, %s51
      %p63 = scmp.eq.s32.totalorder %s20, 1
      %p64 = por %p62, %p63
      %p66 = scmp.ne.s32.totalorder %s51, %s65
      %p67 = scmp.eq.s32.totalorder %s20, 0
      %p68 = por %p66, %p67
      %s69 = ssub.s32 %s14, %s21
      %p70 = scmp.eq.s32.totalorder %s69, 0
      %s72 = sadd.s32 %s71, 1
      %s73 = scalar_select %p70, %s71, %s72
      %p76 = pneg %p70
      %p77 = scmp.eq.s32.totalorder %s14, 1
      %p78 = por %p76, %p77
      %p79 = scmp.ne.s32.totalorder %s71, %s74
      %p80 = scmp.eq.s32.totalorder %s14, 0
      %p81 = por %p79, %p80
      %p82 = scmp.ne.s32.totalorder %s71, %s74
      %p83 = scmp.eq.s32.totalorder %s19, 1
      %p84 = por %p82, %p83
      %p85 = scmp.ne.s32.totalorder %s74, %s75
      %p86 = scmp.eq.s32.totalorder %s19, 0
      %p87 = por %p85, %p86
      %p88 = scmp.ne.s32.totalorder %s74, %s75
      %p89 = scmp.eq.s32.totalorder %s20, 1
      %p90 = por %p88, %p89
      %p92 = scmp.ne.s32.totalorder %s75, %s91
      %p93 = scmp.eq.s32.totalorder %s20, 0
      %p94 = por %p92, %p93
      %p95 = scmp.le.s32.totalorder 1, %s14
      %p96 = scmp.lt.s32.totalorder %s14, 3
      %p97 = pnand %p95, %p96
      %p98 = pneg %p97
      // Predicated region
      $region9: #{tpu_custom_call.1} parent=5 // pred_check
        _
      $region10: #{tpu_custom_call.1} parent=5 // pred_check_branch
        %100 = sbr.rel (%p97) target = $region12
      $region11: #{tpu_custom_call.1} parent=5 // pred_region
        %s101 = ssub.s32 %s14, 1
        // Predicated region
        $region13: #{tpu_custom_call.1} parent=11 // pred_check
          %p102 = pneg %p61
        $region14: #{tpu_custom_call.1} parent=11 // pred_check_branch
          %104 = sbr.rel (%p102) target = $region16
        $region15: #{tpu_custom_call.1} parent=11 // pred_region
          _
        $region16: #{tpu_custom_call.1} parent=11 // pred_fallthru
          _
      $region12: #{tpu_custom_call.1} parent=5 // pred_fallthru
        _
      %p105 = scmp.lt.s32.totalorder %s14, 2
      // Predicated region
      $region17: #{tpu_custom_call.1} parent=5 // pred_check
        %p106 = pneg %p105
      $region18: #{tpu_custom_call.1} parent=5 // pred_check_branch
        %108 = sbr.rel (%p106) target = $region20
      $region19: #{tpu_custom_call.1} parent=5 // pred_region
        // Predicated region
        $region21: #{tpu_custom_call.1} parent=19 // pred_check
          %p109 = pneg %p34
        $region22: #{tpu_custom_call.1} parent=19 // pred_check_branch
          %111 = sbr.rel (%p109) target = $region24
        $region23: #{tpu_custom_call.1} parent=19 // pred_region
          %s112 = sand.u32 %s24, 1
          %s113 = scalar_lea.sflag [#allocation3], %s112
          %s114 = sand.u32 %s24, 1
          %s115 = smul.addr %s114, 16
          %s116 = scalar_lea.vmem [#allocation2], %s115
          %118 = vsyncadd %s113, 0
          %s119 = smul.addr %s14, 2
          %s120 = smul.addr %s119, 8
          %s121 = scalar_lea.hbm %s0, %s120
          %s123 = sshll.u32 %s121, 4
          %s124 = int_to_ptr.hbm [resolvable:$true] %s123
          %s125 = sshll.u32 %s116, 4
          %s126 = int_to_ptr.vmem [resolvable:$true] %s125
          %128 = dma.hbm_to_vmem [thread:$0]  %s124, 256, %s126, %s113
        $region24: #{tpu_custom_call.1} parent=19 // pred_fallthru
          _
      $region20: #{tpu_custom_call.1} parent=5 // pred_fallthru
        _
      %p129 = scmp.le.s32.totalorder 1, %s14
      %p130 = scmp.lt.s32.totalorder %s14, 3
      %p131 = pnand %p129, %p130
      %p132 = pneg %p131
      // Predicated region
      $region25: #{tpu_custom_call.1} parent=5 // pred_check
        _
      $region26: #{tpu_custom_call.1} parent=5 // pred_check_branch
        %134 = sbr.rel (%p131) target = $region28
      $region27: #{tpu_custom_call.1} parent=5 // pred_region
        %s135 = ssub.s32 %s14, 1
        %s136 = sand.u32 %s27, 1
        %s137 = scalar_lea.sflag [#allocation3], %s136
        %s138 = sand.u32 %s27, 1
        %s139 = smul.addr %s138, 16
        %s140 = scalar_lea.vmem [#allocation2], %s139
        // Predicated region
        $region29: #{tpu_custom_call.1} parent=27 // pred_check
          %p141 = pneg %p40
        $region30: #{tpu_custom_call.1} parent=27 // pred_check_branch
          %143 = sbr.rel (%p141) target = $region32
        $region31: #{tpu_custom_call.1} parent=27 // pred_region
          %145 = dma.done %s137, 256
        $region32: #{tpu_custom_call.1} parent=27 // pred_fallthru
          _
        %s146 = sand.u32 %s27, 1
        %s147 = scalar_lea.sflag [#allocation3], %s146
        %s148 = sand.u32 %s27, 1
        %s149 = smul.addr %s148, 16
        %s150 = scalar_lea.vmem [#allocation2], %s149
        %p151 = pneg %p40
        %p152 = pneg %p37
        %p153 = pneg %p61
        %p154 = pneg %p58
        %p155 = pneg %p87
        %p156 = pneg %p84
        %s157 = sand.u32 %s74, 1
        %s158 = scalar_lea.sflag [#allocation4], %s157
        %s159 = sand.u32 %s74, 1
        %s160 = smul.addr %s159, 16
        %s161 = scalar_lea.vmem [#allocation5], %s160
        %v162 = vld [vmem:[%s140] sm:$0xff]
        %v163 = vld [vmem:[%s140 + $0x8] sm:$0xff]
        %v164 = vld [vmem:[%s1] sm:$0xff]
        %v165 = vmul.f32 %v162, %v162
        %v166 = vmul.f32 %v163, %v163
        %v167 = vadd.f32 %v165, %v166
        %168 = vadd.xlane.f32.xlu0 %v167
        %v169 = vpop.xlane.xlu0 %168
        %v170 = vadd.f32 %v169, 1e-05
        %v171 = vrsqrt.pop %v170
        %v172 = vmul.f32 %v171, %v170
        %v173 = vmul.f32 %v172, %v171
        %v174 = vmul.f32 0.5, %v173
        %v175 = vsub.f32 1.5, %v174
        %v176 = vmul.f32 %v171, %v175
        %v177 = vmul.f32 %v170, %v176
        %vm178 = vcmp.eq.f32.partialorder %v170, inf
        %v179 = vsel %vm178, %v170, %v177
        %vm180 = vcmp.eq.f32.partialorder %v170, 0.0
        %v181 = vand.u32 %v170, 2147483648
        %v182 = vsel %vm180, %v181, %v179
        %v183 = vmul.f32 %v182, %v164
        %v184 = vmul.f32 %v183, %v183
        %vm185 = vcmask 7168
        %v186 = vsel %vm185, %v184, 0.0
        %v187 = vrot.slane %v186, 4
        %v188 = vadd.f32 %v186, %v187
        %v189 = vrot.slane %v188, 2
        %v190 = vadd.f32 %v188, %v189
        %v191 = vrot.slane %v190, 1
        %v192 = vadd.f32 %v190, %v191
        %v193 = vrcp.pop 8.0
        %v194 = vmul.f32 8.0, %v193
        %v195 = vsub.f32 1.0, %v194
        %v196 = vmul.f32 %v193, %v195
        %v197 = vadd.f32 %v193, %v196
        %vm198 = vweird.f32 %v193
        %v199 = vsel %vm198, %v193, %v197
        %v200 = vmul.f32 %v192, %v199
        %v201 = vadd.f32 %v200, 1e-05
        %v202 = vrsqrt.pop %v201
        %v203 = vmul.f32 %v202, %v201
        %v204 = vmul.f32 %v203, %v202
        %v205 = vmul.f32 0.5, %v204
        %v206 = vsub.f32 1.5, %v205
        %v207 = vmul.f32 %v202, %v206
        %vm208 = vweird.f32 %v201
        %vm209 = vweird.f32 %v202
        %vm210 = vmor %vm208, %vm209
        %v211 = vsel %vm210, %v202, %v207
        %213 = vrot.lane.b32.xlu0 %v211, 1
        %v214 = vpop.permute.xlu0 %213
        %v216 = vmul.f32 %v164, %v214
        %218 = vrot.lane.b32.xlu0 %v216, 127
        %v219 = vpop.permute.xlu0 %218
        %v221 = vmul.f32 %v183, %v219
        %223 = vrot.lane.b32.xlu0 %v164, 126
        %v224 = vpop.permute.xlu0 %223
        %v226 = vadd.f32 %v221, %v224
        %v227 = vtanh.pop %v226
        %v228 = vadd.f32 %v227, 1.0
        %230 = vset.pattern.permute.xlu0 0
        %231 = vperm.xlu0 %230, %v228
        %v232 = vpop.permute.xlu0 %231
        %v234 = vmul.f32 %v162, %v232
        %v235 = vmul.f32 %v163, %v232
        %236 = vst [vmem:[%s161] sm:$0xff] %v234
        %237 = vst [vmem:[%s161 + $0x8] sm:$0xff] %v235
        %s238 = sand.u32 %s74, 1
        %s239 = scalar_lea.sflag [#allocation4], %s238
        %s240 = sand.u32 %s74, 1
        %s241 = smul.addr %s240, 16
        %s242 = scalar_lea.vmem [#allocation5], %s241
        // Predicated region
        $region33: #{tpu_custom_call.1} parent=27 // pred_check
          %p243 = pneg %p84
        $region34: #{tpu_custom_call.1} parent=27 // pred_check_branch
          %245 = sbr.rel (%p243) target = $region36
        $region35: #{tpu_custom_call.1} parent=27 // pred_region
          %247 = vsyncadd %s239, 0
          %s248 = smul.addr %s19, 2
          %s249 = smul.addr %s248, 8
          %s250 = scalar_lea.hbm %s2, %s249
          %s252 = sshll.u32 %s242, 4
          %s253 = int_to_ptr.vmem [resolvable:$true] %s252
          %s254 = sshll.u32 %s250, 4
          %s255 = int_to_ptr.hbm [resolvable:$true] %s254
          %257 = dma.vmem_to_hbm [thread:$0]  %s253, 256, %s255, %s239
        $region36: #{tpu_custom_call.1} parent=27 // pred_fallthru
          _
      $region28: #{tpu_custom_call.1} parent=5 // pred_fallthru
        _
      %p258 = scmp.le.s32.totalorder 2, %s14
      // Predicated region
      $region37: #{tpu_custom_call.1} parent=5 // pred_check
        %p259 = pneg %p258
      $region38: #{tpu_custom_call.1} parent=5 // pred_check_branch
        %261 = sbr.rel (%p259) target = $region40
      $region39: #{tpu_custom_call.1} parent=5 // pred_region
        %s262 = ssub.s32 %s14, 2
        // Predicated region
        $region41: #{tpu_custom_call.1} parent=39 // pred_check
          %p263 = pneg %p90
        $region42: #{tpu_custom_call.1} parent=39 // pred_check_branch
          %265 = sbr.rel (%p263) target = $region44
        $region43: #{tpu_custom_call.1} parent=39 // pred_region
          %s266 = sand.u32 %s75, 1
          %s267 = scalar_lea.sflag [#allocation4], %s266
          %s268 = sand.u32 %s75, 1
          %s269 = smul.addr %s268, 16
          %s270 = scalar_lea.vmem [#allocation5], %s269
          %272 = dma.done %s267, 256
        $region44: #{tpu_custom_call.1} parent=39 // pred_fallthru
          _
      $region40: #{tpu_custom_call.1} parent=5 // pred_fallthru
        _
    $region6: #{tpu_custom_call.1} parent=1 // loop_footer
      %s18 = sadd.s32 1, %s14
    $region7: #{tpu_custom_call.1} parent=1 // loop_footer_branch
      %13 = sbr.rel target = $region3
    $region8: #{tpu_custom_call.1} parent=1 // loop_exit
      _
    %273 = vsyncpa [#allocation3], 1
    %s274 = scalar_lea.sflag [#allocation3], 1
    %275 = vsyncpa %s274, 1
    %276 = vsyncpa [#allocation4], 1
    %s277 = scalar_lea.sflag [#allocation4], 1
    %278 = vsyncpa %s277, 1

</llo_original>
